<compile_context>
chip_gen: v7x
topology: tpu7x:2x2x1
jax: 0.10.0
libtpu: 0.0.40
codegen_flags: <defaults>
</compile_context>

<pallas_src>
import functools

import jax
import jax.numpy as jnp
from jax.experimental import pallas as pl
from jax.experimental.pallas import tpu as pltpu


# ---------------------------------------------------------------------------
# Kernel
# ---------------------------------------------------------------------------
def _sample_margin_kernel(logits_ref, labels_ref, out_ref, *, total_n, tile_n):
    i = pl.program_id(0)

    logits = logits_ref[...]                               # (tile_n, C), native dtype
    labels = labels_ref[...]                               # (tile_n, 1) int32
    tn, c = logits.shape

    # Per-row one-hot mask via a broadcasted class-index iota (no gather).
    class_ids = jax.lax.broadcasted_iota(jnp.int32, (tn, c), 1)
    is_true = class_ids == labels                          # (tile_n, C) bool

    # Keep full-tile selects/reductions in the native dtype (exact: l1 sums a
    # single nonzero per row, l2 is an order statistic, -1 is representable).
    zero = jnp.zeros((), dtype=logits.dtype)
    neg_one = jnp.full((), -1.0, dtype=logits.dtype)
    l1 = jnp.sum(jnp.where(is_true, logits, zero), axis=1, keepdims=True)
    l2 = jnp.max(jnp.where(is_true, neg_one, logits), axis=1, keepdims=True)

    # Upcast only the narrow (tile_n, 1) per-row values to f32.
    diff = l2.astype(jnp.float32) - l1.astype(jnp.float32)

    # Mask padded tail rows of the last (partial) block.
    row_ids = i * tile_n + jax.lax.broadcasted_iota(jnp.int32, (tn, 1), 0)
    valid = row_ids < total_n

    # One partial sum per block -> own output slot (grid axis is "parallel").
    out_ref[0, 0] = jnp.sum(jnp.where(valid, diff, jnp.float32(0.0)))


# ---------------------------------------------------------------------------
# Tile sizing (layout-aware, generation-tiered)
# ---------------------------------------------------------------------------
def _vmem_capacity_bytes():
    try:
        return int(pltpu.get_tpu_info().vmem_capacity_bytes)
    except Exception:
        return 64 * 1024 * 1024          # v7x-safe fallback


def _sublane_multiple(dtype):
    # 8 rows for 4-byte dtypes, 16 for bf16/f16, 32 for int8/fp8.
    return max(8, 32 // jnp.dtype(dtype).itemsize)


def _per_row_bytes(c, dtype):
    """Resident VMEM bytes per logits row: double-buffered logits block
    (lane-padded to 128), double-buffered lane-padded int32 labels column,
    plus ~two f32-width temporaries for the in-kernel selects/reductions."""
    itemsize = jnp.dtype(dtype).itemsize
    c_pad = ((c + 127) // 128) * 128
    return 2 * c_pad * itemsize + 2 * 128 * 4 + 2 * c_pad * 4


def _pick_tile_n(n, c, dtype, budget_bytes):
    sub = _sublane_multiple(dtype)
    rows = budget_bytes // _per_row_bytes(c, dtype)
    rows = max(sub, (rows // sub) * sub)
    # Whole batch in one (always-legal, full-extent) block if it fits.
    return n if rows >= n else int(rows)


# ---------------------------------------------------------------------------
# Wrapper
# ---------------------------------------------------------------------------
def sample_margin_loss(logits, labels, *, tile_n=None):
    """logits: (N, C) float (any dtype), labels: (N,) int -> scalar float32."""
    n, c = logits.shape
    cap = _vmem_capacity_bytes()
    budget = (cap * 5) // 8               # ~40 MiB v7x, ~80 MiB v5e/v6e
    if tile_n is None:
        tile_n = _pick_tile_n(n, c, logits.dtype, budget)

    sub = _sublane_multiple(logits.dtype)
    tile_n_pad = ((tile_n + sub - 1) // sub) * sub
    need = _per_row_bytes(c, logits.dtype) * tile_n_pad
    vmem_limit = int(min(cap - (8 << 20), max(need + (8 << 20), 32 << 20)))

    labels_col = labels.astype(jnp.int32).reshape(n, 1)
    grid_n = pl.cdiv(n, tile_n)

    kernel = functools.partial(_sample_margin_kernel, total_n=n, tile_n=tile_n)

    partials = pl.pallas_call(
        kernel,
        out_shape=jax.ShapeDtypeStruct((grid_n, 1), jnp.float32),
        grid=(grid_n,),
        in_specs=[
            pl.BlockSpec((tile_n, c), lambda i: (i, 0)),   # logits, native dtype
            pl.BlockSpec((tile_n, 1), lambda i: (i, 0)),   # labels column
        ],
        out_specs=pl.BlockSpec((1, 1), lambda i: (i, 0),
                               memory_space=pltpu.SMEM),
        compiler_params=pltpu.CompilerParams(
            dimension_semantics=("parallel",),
            vmem_limit_bytes=vmem_limit),
    )(logits, labels_col)

    return jnp.sum(partials) / jnp.float32(n)


# ---------------------------------------------------------------------------
# Pure-JAX reference
# ---------------------------------------------------------------------------
def _reference(logits, labels):
    c = logits.shape[1]
    lg = logits.astype(jnp.float32)
    one_hot = jax.nn.one_hot(labels, c, dtype=jnp.float32)
    l1 = jnp.sum(lg * one_hot, axis=1)
    tmp = lg * (1.0 - one_hot) - one_hot
    l2 = jnp.max(tmp, axis=1)
    return jnp.mean(l2 - l1)


if __name__ == "__main__":
    key = jax.random.PRNGKey(0)
    k1, k2, k3, k4 = jax.random.split(key, 4)

    # Test 1: small shape implied by the module (batch=8, classes=16).
    n1, c1 = 8, 16
    logits1 = jax.random.normal(k1, (n1, c1), dtype=jnp.float32)
    labels1 = jax.random.randint(k2, (n1,), 0, c1, dtype=jnp.int32)
    got1 = jax.block_until_ready(sample_margin_loss(logits1, labels1))
    ref1 = jax.block_until_ready(_reference(logits1, labels1))
    assert jnp.allclose(got1, ref1, atol=1e-5, rtol=1e-5), (got1, ref1)

    # Test 2: N not a multiple of the tile -> multi-block partial-sum path
    # (parallel grid axis) plus tail-row masking of the padded last block.
    n2, c2 = 20, 16
    logits2 = jax.random.normal(k3, (n2, c2), dtype=jnp.float32)
    labels2 = jax.random.randint(k4, (n2,), 0, c2, dtype=jnp.int32)
    got2 = jax.block_until_ready(sample_margin_loss(logits2, labels2, tile_n=8))
    ref2 = jax.block_until_ready(_reference(logits2, labels2))
    assert jnp.allclose(got2, ref2, atol=1e-5, rtol=1e-5), (got2, ref2)

    # Test 3: bf16 logits stay narrow in HBM and in-kernel (native-dtype math).
    logits3 = logits2.astype(jnp.bfloat16)
    got3 = jax.block_until_ready(sample_margin_loss(logits3, labels2))
    ref3 = jax.block_until_ready(_reference(logits3, labels2))
    assert jnp.allclose(got3, ref3, atol=1e-2, rtol=1e-2), (got3, ref3)

    # Test 4: bf16 multi-block (sublane-aligned 16-row tile) with tail mask.
    got4 = jax.block_until_ready(sample_margin_loss(logits3, labels2, tile_n=16))
    assert jnp.allclose(got4, ref3, atol=1e-2, rtol=1e-2), (got4, ref3)

    print("KERNEL_OK")
</pallas_src>

<mosaic_0001>
module attributes {stable_mosaic.version = 11 : i64} {
  func.func @_sample_margin_kernel(%arg0: i32, %arg1: memref<8x16xf32, #tpu.memory_space<vmem>>, %arg2: memref<8x1xi32, #tpu.memory_space<vmem>>, %arg3: memref<1x1xf32, #tpu.memory_space<smem>>) attributes {dimension_semantics = [#tpu.dimension_semantics<parallel>], iteration_bounds = array<i64: 1>, scalar_prefetch = 0 : i64, scratch_operands = 0 : i64, tpu.core_type = #tpu.core_type<tc>, window_params = [{transform_indices = @transform_0, window_bounds = array<i64: 8, 16>}, {transform_indices = @transform_1, window_bounds = array<i64: 8, 1>}, {transform_indices = @transform_2, window_bounds = array<i64: 1, 1>}]} {
    %c0 = arith.constant 0 : index
    %c0_0 = arith.constant 0 : index
    %0 = vector.load %arg1[%c0, %c0_0] : memref<8x16xf32, #tpu.memory_space<vmem>>, vector<8x16xf32>
    %c0_1 = arith.constant 0 : index
    %c0_2 = arith.constant 0 : index
    %1 = vector.load %arg2[%c0_1, %c0_2] : memref<8x1xi32, #tpu.memory_space<vmem>>, vector<8x1xi32>
    %2 = tpu.iota {dimensions = array<i32: 1>} : vector<8x16xi32>
    %3 = vector.broadcast %1 : vector<8x1xi32> to vector<8x16xi32>
    %4 = arith.cmpi eq, %2, %3 : vector<8x16xi32>
    %cst = arith.constant 0.000000e+00 : f32
    %5 = vector.broadcast %cst : f32 to vector<8x16xf32>
    %6 = arith.select %4, %0, %5 : vector<8x16xi1>, vector<8x16xf32>
    %cst_3 = arith.constant dense<0.000000e+00> : vector<8xf32>
    %7 = vector.multi_reduction <add>, %6, %cst_3 [1] : vector<8x16xf32> to vector<8xf32>
    %8 = vector.shape_cast %7 : vector<8xf32> to vector<8x1xf32>
    %cst_4 = arith.constant -1.000000e+00 : f32
    %9 = vector.broadcast %cst_4 : f32 to vector<8x16xf32>
    %10 = arith.select %4, %9, %0 : vector<8x16xi1>, vector<8x16xf32>
    %cst_5 = arith.constant dense<0xFF800000> : vector<8xf32>
    %11 = vector.multi_reduction <maximumf>, %10, %cst_5 [1] : vector<8x16xf32> to vector<8xf32>
    %12 = vector.shape_cast %11 : vector<8xf32> to vector<8x1xf32>
    %13 = arith.subf %12, %8 : vector<8x1xf32>
    %c8_i32 = arith.constant 8 : i32
    %14 = arith.muli %arg0, %c8_i32 : i32
    %15 = tpu.iota {dimensions = array<i32: 0>} : vector<8x1xi32>
    %16 = vector.broadcast %14 : i32 to vector<8x1xi32>
    %17 = arith.addi %16, %15 : vector<8x1xi32>
    %c8_i32_6 = arith.constant 8 : i32
    %18 = vector.broadcast %c8_i32_6 : i32 to vector<8x1xi32>
    %19 = arith.cmpi slt, %17, %18 : vector<8x1xi32>
    %cst_7 = arith.constant 0.000000e+00 : f32
    %20 = vector.broadcast %cst_7 : f32 to vector<8x1xf32>
    %21 = arith.select %19, %13, %20 : vector<8x1xi1>, vector<8x1xf32>
    %22 = vector.shape_cast %21 : vector<8x1xf32> to vector<1x8x1xf32>
    %cst_8 = arith.constant dense<0.000000e+00> : vector<1xf32>
    %23 = vector.multi_reduction <add>, %22, %cst_8 [1, 2] : vector<1x8x1xf32> to vector<1xf32>
    %24 = vector.shape_cast %23 : vector<1xf32> to vector<1x1x1xf32>
    %25 = vector.extract %24[0, 0, 0] : f32 from vector<1x1x1xf32>
    %c0_9 = arith.constant 0 : index
    %c0_10 = arith.constant 0 : index
    %26 = memref.load %arg3[%c0_9, %c0_10] : memref<1x1xf32, #tpu.memory_space<smem>>
    memref.store %25, %arg3[%c0_9, %c0_10] : memref<1x1xf32, #tpu.memory_space<smem>>
    return
  }
  func.func @transform_0(%arg0: i32) -> (i32, i32) {
    %c0_i32 = arith.constant 0 : i32
    %c0_i32_0 = arith.constant 0 : i32
    return %arg0, %c0_i32 : i32, i32
  }
  func.func @transform_1(%arg0: i32) -> (i32, i32) {
    %c0_i32 = arith.constant 0 : i32
    %c0_i32_0 = arith.constant 0 : i32
    return %arg0, %c0_i32 : i32, i32
  }
  func.func @transform_2(%arg0: i32) -> (i32, i32) {
    %c0_i32 = arith.constant 0 : i32
    %c0_i32_0 = arith.constant 0 : i32
    return %arg0, %c0_i32 : i32, i32
  }
}

</mosaic_0001>

<llo_original>
// kernel: tpu_custom_call.1
$region0: #{tpu_custom_call.1}
  #allocation0 [shape = 'u32[]', space=smem, size = 0x4, offset = 0x4, fixed_abs, tag = 'smem constant byte address 0x4 - core index']
  #allocation1 [shape = 'u32[144,128]{1,0:T(1,128)}', space=vmem, size = 0x12000, scoped, tag = 'internal scratch']
  %s0 = inlined_call_operand.vmem [shape: f32[8,16], index: 0, kind: input, shape index: {}]
  %s1 = inlined_call_operand.vmem [shape: s32[8,1], index: 1, kind: input, shape index: {}]
  %s2 = inlined_call_operand.hbm [shape: f32[1,1], index: 2, kind: output, shape index: {}]
  %s3 = sld [smem:[#allocation0]]
  $region18: #{tpu_custom_call.1} parent=0
    _
  %s5 = ssub.s32 1, %s3
  %s6 = scalar_select 0, %s5, %s3
  $region1: #{tpu_custom_call.1} parent=0
    #allocation2 [shape = 'u8[512]{0}', space=smem, size = 0x200, scoped, tag = 'output window, operand 0, single buffered']
    #allocation3 [shape = 's32[1]{0}', space=sflag, size = 0x4, scoped, tag = 'scoped memory for tpu_custom_call.1']
    %7 = vsyncpa [#allocation3], 0
    // Predicated region
    $region2: #{tpu_custom_call.1} parent=1 // pred_check
      _
    $region3: #{tpu_custom_call.1} parent=1 // pred_check_branch
      %9 = sbr.rel (0) target = $region5
    $region4: #{tpu_custom_call.1} parent=1 // pred_region
      _
    $region5: #{tpu_custom_call.1} parent=1 // pred_fallthru
      _
    // Predicated region
    $region6: #{tpu_custom_call.1} parent=1 // pred_check
      _
    $region7: #{tpu_custom_call.1} parent=1 // pred_check_branch
      %11 = sbr.rel (0) target = $region9
    $region8: #{tpu_custom_call.1} parent=1 // pred_region
      _
    $region9: #{tpu_custom_call.1} parent=1 // pred_fallthru
      _
    %v12 = vld [vmem:[%s0] sm:$0xff]
    %v13 = vld [vmem:[%s1] sm:$0xff]
    %v14 = vlaneseq
    %v15 = vand.u32 %v14, 127
    %16 = vset.pattern.permute.xlu0 0
    %17 = vperm.xlu0 %16, %v13
    %v18 = vpop.permute.xlu0 %17
    %vm19 = vcmp.eq.s32.totalorder %v15, %v18
    %v20 = vsel %vm19, %v12, 0.0
    %vm21 = vcmask 130048
    %v22 = vsel %vm21, %v20, 0.0
    %23 = vadd.xlane.f32.xlu0 %v22
    %v24 = vpop.xlane.xlu0 %23
    %v25 = vsel %vm19, -1.0, %v12
    %v26 = vsel %vm21, %v25, -inf
    %27 = vmax.xlane.f32.xlu0 %v26
    %v28 = vpop.xlane.xlu0 %27
    %v29 = vsub.f32 %v28, %v24
    %s30 = smul.u32 0, 8
    %v31 = vlaneseq
    %v32 = vshrl.u32 %v31, 7
    %v33 = vstv %s30
    %v34 = vadd.s32 %v33, %v32
    %vm35 = vcmp.lt.s32.totalorder %v34, 8
    %v36 = vsel %vm35, %v29, 0.0
    %vm37 = vcmask 7168
    %v38 = vsel %vm37, %v36, 0.0
    %39 = vadd.xlane.f32.xlu0 %v38
    %v40 = vpop.xlane.xlu0 %39
    %v41 = vrot.slane %v40, 4
    %v42 = vadd.f32 %v40, %v41
    %v43 = vrot.slane %v42, 2
    %v44 = vadd.f32 %v42, %v43
    %v45 = vrot.slane %v44, 1
    %v46 = vadd.f32 %v44, %v45
    %s47 = vtos %v46
    %s48 = scalar_lea.smem [#allocation2], 0
    %49 = sst [smem:[%s48]] %s47
    // Predicated region
    $region10: #{tpu_custom_call.1} parent=1 // pred_check
      _
    $region11: #{tpu_custom_call.1} parent=1 // pred_check_branch
      %51 = sbr.rel (0) target = $region13
    $region12: #{tpu_custom_call.1} parent=1 // pred_region
      %s53 = ssub.s32 16, 16
      %54 = vsyncadd [#allocation3], %s53
      %57 = dma.smem_to_hbm [#allocation2], 16, %s2, [#allocation3]
    $region13: #{tpu_custom_call.1} parent=1 // pred_fallthru
      _
    // Predicated region
    $region14: #{tpu_custom_call.1} parent=1 // pred_check
      _
    $region15: #{tpu_custom_call.1} parent=1 // pred_check_branch
      %59 = sbr.rel (0) target = $region17
    $region16: #{tpu_custom_call.1} parent=1 // pred_region
      %60 = dma.done [#allocation3], 16
    $region17: #{tpu_custom_call.1} parent=1 // pred_fallthru
      _
    %61 = sfence
    %62 = vsyncpa [#allocation3], 1

</llo_original>
